<compile_context>
chip_gen: v7x
topology: tpu7x:2x2x1
jax: 0.10.0
libtpu: 0.0.40
codegen_flags: <defaults>
</compile_context>

<pallas_src>
import jax
import jax.numpy as jnp
from jax.experimental import pallas as pl
from jax.experimental.pallas import tpu as pltpu


_H1, _H2, _OUT = 256, 128, 3
_OUT_PAD = 8   # sublane-padded row count of the transposed output


def _mlp_kernel(x_ref, w1_ref, b1_ref, w2_ref, b2_ref, w3t_ref, b3t_ref, ot_ref):
    # Matmuls in bf16 on the MXU, f32 accumulation.  Bias-add + sigmoid in f32
    # (keeps the VPU/EUP path f32-only, which v5e requires).  Dropout == id.
    x = x_ref[...].astype(jnp.bfloat16)
    h1 = jnp.dot(x, w1_ref[...], preferred_element_type=jnp.float32)
    # sigmoid(x) == 0.5*tanh(0.5*x) + 0.5: single EUP op instead of exp+recip.
    # Downcast fused into the activation so the materialized (TB, 256)
    # intermediate is bf16 (it is consumed in bf16 by the next matmul anyway).
    h1 = (0.5 * jnp.tanh(0.5 * (h1 + b1_ref[...])) + 0.5).astype(jnp.bfloat16)
    h2 = jnp.dot(h1, w2_ref[...], preferred_element_type=jnp.float32)
    h2 = (0.5 * jnp.tanh(0.5 * (h2 + b2_ref[...])) + 0.5).astype(jnp.bfloat16)
    # Final layer computed transposed: (8, 128) contracted with (TB, 128) on
    # the last axis -> (8, TB).  Lane axis = TB (multiple of 128 when tiled),
    # so the store is lane-dense; rows 3..7 are zero padding.
    ot = jax.lax.dot_general(
        w3t_ref[...], h2, (((1,), (1,)), ((), ())),
        preferred_element_type=jnp.float32)
    ot_ref[...] = (ot + b3t_ref[...]).astype(ot_ref.dtype)


def _round_up(n, m):
    return ((n + m - 1) // m) * m


@jax.jit
def spendings_predictor3_forward(x, w1, b1, w2, b2, w3, b3):
    """Fused 3-layer MLP forward. x: [B, D_in] float32 -> [B, 3] float32."""
    B, D = x.shape
    # Batch tile:
    #  * B <= 1024: a single full-batch tile (block == full array, so the
    #    (8,128) divisibility rule is trivially satisfied for any B, D).
    #  * larger B: >= 2 tiles (lets v7x shard across its 2 TensorCores), with
    #    TB a multiple of 128 (TB is the lane axis of the transposed output)
    #    and capped at 2048 to amortize the ~0.35us/grid-step overhead while
    #    keeping per-step VMEM at a few MiB on every generation.
    if B <= 1024:
        TB = _round_up(B, 8)
    else:
        TB = min(2048, _round_up((B + 1) // 2, 128))
    B_pad = _round_up(B, TB)
    if B_pad != B:
        x = jnp.pad(x, ((0, B_pad - B), (0, 0)))
    num_tiles = B_pad // TB

    # Weights as bf16 (MXU-native, halves weight DMA); biases stay f32.
    w1b = w1.astype(jnp.bfloat16)
    w2b = w2.astype(jnp.bfloat16)
    # Layer 3 stored transposed + sublane-padded to 8 rows (rows 3..7 zero).
    w3t = jnp.zeros((_OUT_PAD, _H2), jnp.bfloat16).at[:_OUT, :].set(
        w3.astype(jnp.bfloat16).T)
    b3t = jnp.zeros((_OUT_PAD, 1), jnp.float32).at[:_OUT, 0].set(
        b3.reshape(_OUT).astype(jnp.float32))

    # Weights/biases VMEM-resident via constant index_maps.
    const2d = lambda a: pl.BlockSpec(a.shape, lambda i: (0, 0))
    # TODO(synk): for very large D (resident W1 nearing the scoped-VMEM limit
    # on v5e/v7x), add a K-tiled "arbitrary" grid axis over D + f32 accumulator.

    flops = 2 * B_pad * (D * _H1 + _H1 * _H2 + _H2 * _OUT_PAD)
    bytes_accessed = (
        B_pad * D * 4 + _OUT_PAD * B_pad * 4                     # x in, out_T
        + (D * _H1 + _H1 * _H2 + _OUT_PAD * _H2) * 2             # bf16 weights
        + (_H1 + _H2 + _OUT_PAD) * 4                             # f32 biases
    )

    out_t = pl.pallas_call(
        _mlp_kernel,
        out_shape=jax.ShapeDtypeStruct((_OUT_PAD, B_pad), jnp.float32),
        grid=(num_tiles,),
        in_specs=[
            pl.BlockSpec((TB, D), lambda i: (i, 0)),   # x: tiled over batch
            const2d(w1b), const2d(b1),                 # resident weights/biases
            const2d(w2b), const2d(b2),
            const2d(w3t), const2d(b3t),
        ],
        out_specs=pl.BlockSpec((_OUT_PAD, TB), lambda i: (0, i)),
        compiler_params=pltpu.CompilerParams(
            dimension_semantics=("parallel",)),
        cost_estimate=pl.CostEstimate(
            flops=flops,
            transcendentals=B_pad * (_H1 + _H2),
            bytes_accessed=bytes_accessed),
    )(x, w1b, b1, w2b, b2, w3t, b3t)

    # Un-transpose + strip row/batch padding: (8, B_pad) -> (B, 3).
    return out_t[:_OUT, :B].T


def init_params(key, input_size):
    """Deterministic init mimicking PyTorch Linear's U(-1/sqrt(fan_in), 1/sqrt(fan_in))."""
    dims = [(input_size, _H1), (_H1, _H2), (_H2, _OUT)]
    params = []
    for fan_in, fan_out in dims:
        kw, kb, key = jax.random.split(key, 3)
        bound = 1.0 / jnp.sqrt(jnp.float32(fan_in))
        w = jax.random.uniform(kw, (fan_in, fan_out), jnp.float32, -bound, bound)
        b = jax.random.uniform(kb, (1, fan_out), jnp.float32, -bound, bound)
        params += [w, b]
    return params


def reference_forward(x, w1, b1, w2, b2, w3, b3):
    """Pure-JAX reference with the same bf16-matmul / f32-accumulate recipe."""
    bf = jnp.bfloat16
    h1 = jax.nn.sigmoid(
        jnp.dot(x.astype(bf), w1.astype(bf), preferred_element_type=jnp.float32) + b1)
    h2 = jax.nn.sigmoid(
        jnp.dot(h1.astype(bf), w2.astype(bf), preferred_element_type=jnp.float32) + b2)
    return jnp.dot(h2.astype(bf), w3.astype(bf),
                   preferred_element_type=jnp.float32) + b3


if __name__ == "__main__":
    key = jax.random.PRNGKey(0)
    k_x, k_p = jax.random.split(key)

    batch, input_size = 8, 32
    x = jax.random.normal(k_x, (batch, input_size), jnp.float32)
    params = init_params(k_p, input_size)

    out = spendings_predictor3_forward(x, *params)
    out = jax.block_until_ready(out)

    ref = reference_forward(x, *params)
    assert out.shape == (batch, 3), out.shape
    assert jnp.allclose(out, ref, atol=2e-3, rtol=2e-3), (
        float(jnp.max(jnp.abs(out - ref)))
    )
    print("KERNEL_OK")
</pallas_src>

<mosaic_0001>
module attributes {stable_mosaic.version = 11 : i64} {
  func.func @_mlp_kernel(%arg0: i32, %arg1: memref<8x32xf32, #tpu.memory_space<vmem>>, %arg2: memref<32x256xbf16, #tpu.memory_space<vmem>>, %arg3: memref<1x256xf32, #tpu.memory_space<vmem>>, %arg4: memref<256x128xbf16, #tpu.memory_space<vmem>>, %arg5: memref<1x128xf32, #tpu.memory_space<vmem>>, %arg6: memref<8x128xbf16, #tpu.memory_space<vmem>>, %arg7: memref<8x1xf32, #tpu.memory_space<vmem>>, %arg8: memref<8x8xf32, #tpu.memory_space<vmem>>) attributes {dimension_semantics = [#tpu.dimension_semantics<parallel>], iteration_bounds = array<i64: 1>, scalar_prefetch = 0 : i64, scratch_operands = 0 : i64, tpu.core_type = #tpu.core_type<tc>, window_params = [{transform_indices = @transform_0, window_bounds = array<i64: 8, 32>}, {pipeline_mode = #tpu.pipeline_mode<synchronous>, transform_indices = @transform_1, window_bounds = array<i64: 32, 256>}, {pipeline_mode = #tpu.pipeline_mode<synchronous>, transform_indices = @transform_2, window_bounds = array<i64: 1, 256>}, {pipeline_mode = #tpu.pipeline_mode<synchronous>, transform_indices = @transform_3, window_bounds = array<i64: 256, 128>}, {pipeline_mode = #tpu.pipeline_mode<synchronous>, transform_indices = @transform_4, window_bounds = array<i64: 1, 128>}, {pipeline_mode = #tpu.pipeline_mode<synchronous>, transform_indices = @transform_5, window_bounds = array<i64: 8, 128>}, {pipeline_mode = #tpu.pipeline_mode<synchronous>, transform_indices = @transform_6, window_bounds = array<i64: 8, 1>}, {transform_indices = @transform_7, window_bounds = array<i64: 8, 8>}]} {
    %c0 = arith.constant 0 : index
    %c0_0 = arith.constant 0 : index
    %0 = vector.load %arg1[%c0, %c0_0] : memref<8x32xf32, #tpu.memory_space<vmem>>, vector<8x32xf32>
    %1 = arith.truncf %0 : vector<8x32xf32> to vector<8x32xbf16>
    %c0_1 = arith.constant 0 : index
    %c0_2 = arith.constant 0 : index
    %2 = vector.load %arg2[%c0_1, %c0_2] : memref<32x256xbf16, #tpu.memory_space<vmem>>, vector<32x256xbf16>
    %cst = arith.constant dense<0.000000e+00> : vector<8x256xf32>
    %3 = tpu.matmul %1, %2, %cst {dimension_numbers = #tpu.dot_dimension_numbers<[1], [0], [0], [1], [0, 0, 1, 1], [], []>} : vector<8x32xbf16>, vector<32x256xbf16>, vector<8x256xf32> -> vector<8x256xf32>
    %c0_3 = arith.constant 0 : index
    %c0_4 = arith.constant 0 : index
    %4 = vector.load %arg3[%c0_3, %c0_4] : memref<1x256xf32, #tpu.memory_space<vmem>>, vector<1x256xf32>
    %5 = vector.broadcast %4 : vector<1x256xf32> to vector<8x256xf32>
    %6 = arith.addf %3, %5 : vector<8x256xf32>
    %cst_5 = arith.constant 5.000000e-01 : f32
    %7 = vector.broadcast %cst_5 : f32 to vector<8x256xf32>
    %8 = arith.mulf %7, %6 : vector<8x256xf32>
    %9 = math.tanh %8 : vector<8x256xf32>
    %cst_6 = arith.constant 5.000000e-01 : f32
    %10 = vector.broadcast %cst_6 : f32 to vector<8x256xf32>
    %11 = arith.mulf %10, %9 : vector<8x256xf32>
    %cst_7 = arith.constant 5.000000e-01 : f32
    %12 = vector.broadcast %cst_7 : f32 to vector<8x256xf32>
    %13 = arith.addf %11, %12 : vector<8x256xf32>
    %14 = arith.truncf %13 : vector<8x256xf32> to vector<8x256xbf16>
    %c0_8 = arith.constant 0 : index
    %c0_9 = arith.constant 0 : index
    %15 = vector.load %arg4[%c0_8, %c0_9] : memref<256x128xbf16, #tpu.memory_space<vmem>>, vector<256x128xbf16>
    %cst_10 = arith.constant dense<0.000000e+00> : vector<8x128xf32>
    %16 = tpu.matmul %14, %15, %cst_10 {dimension_numbers = #tpu.dot_dimension_numbers<[1], [0], [0], [1], [0, 0, 1, 1], [], []>} : vector<8x256xbf16>, vector<256x128xbf16>, vector<8x128xf32> -> vector<8x128xf32>
    %c0_11 = arith.constant 0 : index
    %c0_12 = arith.constant 0 : index
    %17 = vector.load %arg5[%c0_11, %c0_12] : memref<1x128xf32, #tpu.memory_space<vmem>>, vector<1x128xf32>
    %18 = vector.broadcast %17 : vector<1x128xf32> to vector<8x128xf32>
    %19 = arith.addf %16, %18 : vector<8x128xf32>
    %cst_13 = arith.constant 5.000000e-01 : f32
    %20 = vector.broadcast %cst_13 : f32 to vector<8x128xf32>
    %21 = arith.mulf %20, %19 : vector<8x128xf32>
    %22 = math.tanh %21 : vector<8x128xf32>
    %cst_14 = arith.constant 5.000000e-01 : f32
    %23 = vector.broadcast %cst_14 : f32 to vector<8x128xf32>
    %24 = arith.mulf %23, %22 : vector<8x128xf32>
    %cst_15 = arith.constant 5.000000e-01 : f32
    %25 = vector.broadcast %cst_15 : f32 to vector<8x128xf32>
    %26 = arith.addf %24, %25 : vector<8x128xf32>
    %27 = arith.truncf %26 : vector<8x128xf32> to vector<8x128xbf16>
    %c0_16 = arith.constant 0 : index
    %c0_17 = arith.constant 0 : index
    %28 = vector.load %arg6[%c0_16, %c0_17] : memref<8x128xbf16, #tpu.memory_space<vmem>>, vector<8x128xbf16>
    %cst_18 = arith.constant dense<0.000000e+00> : vector<8x8xf32>
    %29 = tpu.matmul %28, %27, %cst_18 {dimension_numbers = #tpu.dot_dimension_numbers<[1], [1], [0], [0], [0, 0, 1, 0], [], []>} : vector<8x128xbf16>, vector<8x128xbf16>, vector<8x8xf32> -> vector<8x8xf32>
    %c0_19 = arith.constant 0 : index
    %c0_20 = arith.constant 0 : index
    %30 = vector.load %arg7[%c0_19, %c0_20] : memref<8x1xf32, #tpu.memory_space<vmem>>, vector<8x1xf32>
    %31 = vector.broadcast %30 : vector<8x1xf32> to vector<8x8xf32>
    %32 = arith.addf %29, %31 : vector<8x8xf32>
    %c0_21 = arith.constant 0 : index
    %c0_22 = arith.constant 0 : index
    %33 = vector.load %arg8[%c0_21, %c0_22] : memref<8x8xf32, #tpu.memory_space<vmem>>, vector<8x8xf32>
    tpu.vector_store %arg8[%c0_21, %c0_22], %32 {strides = array<i32>} : memref<8x8xf32, #tpu.memory_space<vmem>>, vector<8x8xf32>,
    return
  }
  func.func @transform_0(%arg0: i32) -> (i32, i32) {
    %c0_i32 = arith.constant 0 : i32
    %c0_i32_0 = arith.constant 0 : i32
    return %arg0, %c0_i32 : i32, i32
  }
  func.func @transform_1(%arg0: i32) -> (i32, i32) {
    %c0_i32 = arith.constant 0 : i32
    %c0_i32_0 = arith.constant 0 : i32
    %c0_i32_1 = arith.constant 0 : i32
    return %c0_i32, %c0_i32_0 : i32, i32
  }
  func.func @transform_2(%arg0: i32) -> (i32, i32) {
    %c0_i32 = arith.constant 0 : i32
    %c0_i32_0 = arith.constant 0 : i32
    %c0_i32_1 = arith.constant 0 : i32
    return %c0_i32, %c0_i32_0 : i32, i32
  }
  func.func @transform_3(%arg0: i32) -> (i32, i32) {
    %c0_i32 = arith.constant 0 : i32
    %c0_i32_0 = arith.constant 0 : i32
    %c0_i32_1 = arith.constant 0 : i32
    return %c0_i32, %c0_i32_0 : i32, i32
  }
  func.func @transform_4(%arg0: i32) -> (i32, i32) {
    %c0_i32 = arith.constant 0 : i32
    %c0_i32_0 = arith.constant 0 : i32
    %c0_i32_1 = arith.constant 0 : i32
    return %c0_i32, %c0_i32_0 : i32, i32
  }
  func.func @transform_5(%arg0: i32) -> (i32, i32) {
    %c0_i32 = arith.constant 0 : i32
    %c0_i32_0 = arith.constant 0 : i32
    %c0_i32_1 = arith.constant 0 : i32
    return %c0_i32, %c0_i32_0 : i32, i32
  }
  func.func @transform_6(%arg0: i32) -> (i32, i32) {
    %c0_i32 = arith.constant 0 : i32
    %c0_i32_0 = arith.constant 0 : i32
    %c0_i32_1 = arith.constant 0 : i32
    return %c0_i32, %c0_i32_0 : i32, i32
  }
  func.func @transform_7(%arg0: i32) -> (i32, i32) {
    %c0_i32 = arith.constant 0 : i32
    %c0_i32_0 = arith.constant 0 : i32
    return %c0_i32, %arg0 : i32, i32
  }
}

</mosaic_0001>

<llo_original>
// kernel: spendings_predictor3_forward.1
$region0: #{spendings_predictor3_forward.1}
  #allocation0 [shape = 'u32[]', space=smem, size = 0x4, offset = 0x4, fixed_abs, tag = 'smem constant byte address 0x4 - core index']
  #allocation1 [shape = 'u32[144,128]{1,0:T(1,128)}', space=vmem, size = 0x12000, scoped, tag = 'internal scratch']
  %s0 = inlined_call_operand.vmem [shape: f32[8,32], index: 0, kind: input, shape index: {}]
  %s1 = inlined_call_operand.vmem [shape: bf16[32,256], index: 1, kind: input, shape index: {}]
  %s2 = inlined_call_operand.vmem [shape: f32[1,256], index: 2, kind: input, shape index: {}]
  %s3 = inlined_call_operand.vmem [shape: bf16[256,128], index: 3, kind: input, shape index: {}]
  %s4 = inlined_call_operand.vmem [shape: f32[1,128], index: 4, kind: input, shape index: {}]
  %s5 = inlined_call_operand.vmem [shape: bf16[8,128], index: 5, kind: input, shape index: {}]
  %s6 = inlined_call_operand.vmem [shape: f32[8,1], index: 6, kind: input, shape index: {}]
  %s7 = inlined_call_operand.vmem [shape: f32[8,8], index: 7, kind: output, shape index: {}]
  %s8 = sld [smem:[#allocation0]]
  $region38: #{spendings_predictor3_forward.1} parent=0
    _
  %s10 = ssub.s32 1, %s8
  %s11 = scalar_select 0, %s10, %s8
  // Predicated region
  $region2: #{spendings_predictor3_forward.1} parent=0 // pred_check
    _
  $region3: #{spendings_predictor3_forward.1} parent=0 // pred_check_branch
    %13 = sbr.rel (0) target = $region5
  $region4: #{spendings_predictor3_forward.1} parent=0 // pred_region
    _
  $region5: #{spendings_predictor3_forward.1} parent=0 // pred_fallthru
    _
  // Predicated region
  $region6: #{spendings_predictor3_forward.1} parent=0 // pred_check
    _
  $region7: #{spendings_predictor3_forward.1} parent=0 // pred_check_branch
    %15 = sbr.rel (0) target = $region9
  $region8: #{spendings_predictor3_forward.1} parent=0 // pred_region
    _
  $region9: #{spendings_predictor3_forward.1} parent=0 // pred_fallthru
    _
  // Predicated region
  $region10: #{spendings_predictor3_forward.1} parent=0 // pred_check
    _
  $region11: #{spendings_predictor3_forward.1} parent=0 // pred_check_branch
    %17 = sbr.rel (0) target = $region13
  $region12: #{spendings_predictor3_forward.1} parent=0 // pred_region
    _
  $region13: #{spendings_predictor3_forward.1} parent=0 // pred_fallthru
    _
  // Predicated region
  $region14: #{spendings_predictor3_forward.1} parent=0 // pred_check
    _
  $region15: #{spendings_predictor3_forward.1} parent=0 // pred_check_branch
    %19 = sbr.rel (0) target = $region17
  $region16: #{spendings_predictor3_forward.1} parent=0 // pred_region
    _
  $region17: #{spendings_predictor3_forward.1} parent=0 // pred_fallthru
    _
  // Predicated region
  $region18: #{spendings_predictor3_forward.1} parent=0 // pred_check
    _
  $region19: #{spendings_predictor3_forward.1} parent=0 // pred_check_branch
    %21 = sbr.rel (0) target = $region21
  $region20: #{spendings_predictor3_forward.1} parent=0 // pred_region
    _
  $region21: #{spendings_predictor3_forward.1} parent=0 // pred_fallthru
    _
  // Predicated region
  $region22: #{spendings_predictor3_forward.1} parent=0 // pred_check
    _
  $region23: #{spendings_predictor3_forward.1} parent=0 // pred_check_branch
    %23 = sbr.rel (0) target = $region25
  $region24: #{spendings_predictor3_forward.1} parent=0 // pred_region
    _
  $region25: #{spendings_predictor3_forward.1} parent=0 // pred_fallthru
    _
  // Predicated region
  $region26: #{spendings_predictor3_forward.1} parent=0 // pred_check
    _
  $region27: #{spendings_predictor3_forward.1} parent=0 // pred_check_branch
    %25 = sbr.rel (0) target = $region29
  $region28: #{spendings_predictor3_forward.1} parent=0 // pred_region
    _
  $region29: #{spendings_predictor3_forward.1} parent=0 // pred_fallthru
    _
  %v27 = vld [vmem:[%s0] sm:$0xff]
  %v28 = vpack.c.bf16 %v27, %v27
  %v29 = vld [vmem:[%s1] sm:$0xff]
  %v30 = vld [vmem:[%s1 + $0x8] sm:$0xff]
  %v31 = vld [vmem:[%s1 + $0x10] sm:$0xff]
  %v32 = vld [vmem:[%s1 + $0x18] sm:$0xff]
  %v33 = vld [vmem:[%s2] sm:$0x3]
  %v35 = vlaneseq
  %v36 = vshrl.u32 %v35, 7
  %v37 = vsub.s32 0, %v36
  %v38 = vrot.slane %v33, %v37
  %v39 = vlaneseq
  %v40 = vshrl.u32 %v39, 7
  %v41 = vsub.s32 1, %v40
  %v42 = vrot.slane %v33, %v41
  %v49 = vunpack.c.l.b16 %v29
  %v50 = vunpack.c.h.b16 %v29
  %v51 = vunpack.c.l.b16 %v30
  %v52 = vunpack.c.h.b16 %v30
  %v53 = vunpack.c.l.b16 %v31
  %v54 = vunpack.c.h.b16 %v31
  %v55 = vunpack.c.l.b16 %v32
  %v56 = vunpack.c.h.b16 %v32
  %v57 = vpack.c.b16 %v51, %v49
  %v58 = vpack.c.b16 %v52, %v50
  %v59 = vpack.c.b16 %v55, %v53
  %v60 = vpack.c.b16 %v56, %v54
  %vm65 = vcmask 261120
  %v67 = vsel %vm65, %v28, 0
  %69 = vmatprep.subr.bf16.mxu0 %v58
  %70 = vmatpush1.bf16.msra.mxu0 %v57
  %71 = vmatprep.subr.bf16.mxu0 %v60
  %72 = vmatpush1.bf16.msra.mxu0 %v59
  %73 = vmatprep.subr.bf16.mxu0 0
  %74 = vmatpush1.bf16.msra.mxu0 0
  %75 = vmatprep.subr.bf16.mxu0 0
  %76 = vmatpush1.bf16.msra.mxu0 0
  %77 = vmatprep.subr.bf16.mxu0 0
  %78 = vmatpush1.bf16.msra.mxu0 0
  %79 = vmatprep.subr.bf16.mxu0 0
  %80 = vmatpush1.bf16.msra.mxu0 0
  %81 = vmatprep.subr.bf16.mxu0 0
  %82 = vmatpush1.bf16.msra.mxu0 0
  %83 = vmatprep.subr.bf16.mxu0 0
  %84 = vmatpush1.bf16.msra.mxu0 0
  %85 = vmatprep.subr.bf16.mxu0 0
  %86 = vmatpush1.bf16.msra.mxu0 0
  %87 = vmatprep.subr.bf16.mxu0 0
  %88 = vmatpush1.bf16.msra.mxu0 0
  %89 = vmatprep.subr.bf16.mxu0 0
  %90 = vmatpush1.bf16.msra.mxu0 0
  %91 = vmatprep.subr.bf16.mxu0 0
  %92 = vmatpush1.bf16.msra.mxu0 0
  %93 = vmatprep.subr.bf16.mxu0 0
  %94 = vmatpush1.bf16.msra.mxu0 0
  %95 = vmatprep.subr.bf16.mxu0 0
  %96 = vmatpush1.bf16.msra.mxu0 0
  %97 = vmatprep.subr.bf16.mxu0 0
  %98 = vmatpush1.bf16.msra.mxu0 0
  %99 = vmatprep.subr.bf16.mxu0 0
  %100 = vmatpush1.bf16.msra.mxu0 0
  %101 = vmatprep.mubr.bf16.mxu0 0
  %102 = vmatmul.mubr.bf16.gmra.mrb[0].mxu0 %v67
  %v103 = vpop.f32.mrb[0].mxu0
  %v104 = vadd.f32 %v38, %v103
  %v105 = vpop.f32.mrb[0].mxu0
  %v106 = vadd.f32 %v42, %v105
  %v107 = vpop.f32.mrb[0].mxu0
  %v108 = vpop.f32.mrb[0].mxu0
  %109 = vdwg.mxu0
  %v110 = vmul.f32 %v104, 0.5
  %v111 = vmul.f32 %v106, 0.5
  %v112 = vtanh.pop %v110
  %v113 = vtanh.pop %v111
  %v114 = vmul.f32 %v112, 0.5
  %v115 = vmul.f32 %v113, 0.5
  %v116 = vadd.f32 %v114, 0.5
  %v117 = vadd.f32 %v115, 0.5
  %v118 = vpack.c.bf16 %v116, %v116
  %v119 = vpack.c.bf16 %v117, %v117
  %v120 = vld [vmem:[%s3] sm:$0xf]
  %v121 = vld [vmem:[%s3 + $0x4] sm:$0xf]
  %v122 = vld [vmem:[%s3 + $0x8] sm:$0xf]
  %v123 = vld [vmem:[%s3 + $0xc] sm:$0xf]
  %v124 = vld [vmem:[%s3 + $0x10] sm:$0xf]
  %v125 = vld [vmem:[%s3 + $0x14] sm:$0xf]
  %v126 = vld [vmem:[%s3 + $0x18] sm:$0xf]
  %v127 = vld [vmem:[%s3 + $0x1c] sm:$0xf]
  %v128 = vld [vmem:[%s3 + $0x20] sm:$0xf]
  %v129 = vld [vmem:[%s3 + $0x24] sm:$0xf]
  %v130 = vld [vmem:[%s3 + $0x28] sm:$0xf]
  %v131 = vld [vmem:[%s3 + $0x2c] sm:$0xf]
  %v132 = vld [vmem:[%s3 + $0x30] sm:$0xf]
  %v133 = vld [vmem:[%s3 + $0x34] sm:$0xf]
  %v134 = vld [vmem:[%s3 + $0x38] sm:$0xf]
  %v135 = vld [vmem:[%s3 + $0x3c] sm:$0xf]
  %v136 = vld [vmem:[%s3 + $0x40] sm:$0xf]
  %v137 = vld [vmem:[%s3 + $0x44] sm:$0xf]
  %v138 = vld [vmem:[%s3 + $0x48] sm:$0xf]
  %v139 = vld [vmem:[%s3 + $0x4c] sm:$0xf]
  %v140 = vld [vmem:[%s3 + $0x50] sm:$0xf]
  %v141 = vld [vmem:[%s3 + $0x54] sm:$0xf]
  %v142 = vld [vmem:[%s3 + $0x58] sm:$0xf]
  %v143 = vld [vmem:[%s3 + $0x5c] sm:$0xf]
  %v144 = vld [vmem:[%s3 + $0x60] sm:$0xf]
  %v145 = vld [vmem:[%s3 + $0x64] sm:$0xf]
  %v146 = vld [vmem:[%s3 + $0x68] sm:$0xf]
  %v147 = vld [vmem:[%s3 + $0x6c] sm:$0xf]
  %v148 = vld [vmem:[%s3 + $0x70] sm:$0xf]
  %v149 = vld [vmem:[%s3 + $0x74] sm:$0xf]
  %v150 = vld [vmem:[%s3 + $0x78] sm:$0xf]
  %v151 = vld [vmem:[%s3 + $0x7c] sm:$0xf]
  %v152 = vld [vmem:[%s4] sm:$0x1]
  %v154 = vlaneseq
  %v155 = vshrl.u32 %v154, 7
  %v156 = vsub.s32 0, %v155
  %v157 = vrot.slane %v152, %v156
  %v191 = vunpack.c.l.b16 %v120
  %v192 = vunpack.c.l.b16 %v121
  %v193 = vunpack.c.l.b16 %v122
  %v194 = vunpack.c.l.b16 %v123
  %v195 = vunpack.c.l.b16 %v124
  %v196 = vunpack.c.l.b16 %v125
  %v197 = vunpack.c.l.b16 %v126
  %v198 = vunpack.c.l.b16 %v127
  %v199 = vunpack.c.l.b16 %v128
  %v200 = vunpack.c.l.b16 %v129
  %v201 = vunpack.c.l.b16 %v130
  %v202 = vunpack.c.l.b16 %v131
  %v203 = vunpack.c.l.b16 %v132
  %v204 = vunpack.c.l.b16 %v133
  %v205 = vunpack.c.l.b16 %v134
  %v206 = vunpack.c.l.b16 %v135
  %v207 = vunpack.c.l.b16 %v136
  %v208 = vunpack.c.l.b16 %v137
  %v209 = vunpack.c.l.b16 %v138
  %v210 = vunpack.c.l.b16 %v139
  %v211 = vunpack.c.l.b16 %v140
  %v212 = vunpack.c.l.b16 %v141
  %v213 = vunpack.c.l.b16 %v142
  %v214 = vunpack.c.l.b16 %v143
  %v215 = vunpack.c.l.b16 %v144
  %v216 = vunpack.c.l.b16 %v145
  %v217 = vunpack.c.l.b16 %v146
  %v218 = vunpack.c.l.b16 %v147
  %v219 = vunpack.c.l.b16 %v148
  %v220 = vunpack.c.l.b16 %v149
  %v221 = vunpack.c.l.b16 %v150
  %v222 = vunpack.c.l.b16 %v151
  %v223 = vpack.c.b16 %v192, %v191
  %v224 = vpack.c.b16 %v194, %v193
  %v225 = vpack.c.b16 %v196, %v195
  %v226 = vpack.c.b16 %v198, %v197
  %v227 = vpack.c.b16 %v200, %v199
  %v228 = vpack.c.b16 %v202, %v201
  %v229 = vpack.c.b16 %v204, %v203
  %v230 = vpack.c.b16 %v206, %v205
  %v231 = vpack.c.b16 %v208, %v207
  %v232 = vpack.c.b16 %v210, %v209
  %v233 = vpack.c.b16 %v212, %v211
  %v234 = vpack.c.b16 %v214, %v213
  %v235 = vpack.c.b16 %v216, %v215
  %v236 = vpack.c.b16 %v218, %v217
  %v237 = vpack.c.b16 %v220, %v219
  %v238 = vpack.c.b16 %v222, %v221
  %255 = vmatprep.subr.bf16.mxu0 0
  %256 = vmatpush1.bf16.msra.mxu0 %v223
  %257 = vmatprep.subr.bf16.mxu0 0
  %258 = vmatpush1.bf16.msra.mxu0 %v224
  %259 = vmatprep.subr.bf16.mxu0 0
  %260 = vmatpush1.bf16.msra.mxu0 %v225
  %261 = vmatprep.subr.bf16.mxu0 0
  %262 = vmatpush1.bf16.msra.mxu0 %v226
  %263 = vmatprep.subr.bf16.mxu0 0
  %264 = vmatpush1.bf16.msra.mxu0 %v227
  %265 = vmatprep.subr.bf16.mxu0 0
  %266 = vmatpush1.bf16.msra.mxu0 %v228
  %267 = vmatprep.subr.bf16.mxu0 0
  %268 = vmatpush1.bf16.msra.mxu0 %v229
  %269 = vmatprep.subr.bf16.mxu0 0
  %270 = vmatpush1.bf16.msra.mxu0 %v230
  %271 = vmatprep.subr.bf16.mxu0 0
  %272 = vmatpush1.bf16.msra.mxu0 %v231
  %273 = vmatprep.subr.bf16.mxu0 0
  %274 = vmatpush1.bf16.msra.mxu0 %v232
  %275 = vmatprep.subr.bf16.mxu0 0
  %276 = vmatpush1.bf16.msra.mxu0 %v233
  %277 = vmatprep.subr.bf16.mxu0 0
  %278 = vmatpush1.bf16.msra.mxu0 %v234
  %279 = vmatprep.subr.bf16.mxu0 0
  %280 = vmatpush1.bf16.msra.mxu0 %v235
  %281 = vmatprep.subr.bf16.mxu0 0
  %282 = vmatpush1.bf16.msra.mxu0 %v236
  %283 = vmatprep.subr.bf16.mxu0 0
  %284 = vmatpush1.bf16.msra.mxu0 %v237
  %285 = vmatprep.subr.bf16.mxu0 0
  %286 = vmatpush1.bf16.msra.mxu0 %v238
  %287 = vmatprep.mubr.bf16.mxu0 %v119
  %288 = vmatmul.mubr.bf16.gmra.mrb[0].mxu0 %v118
  %v289 = vpop.f32.mrb[0].mxu0
  %v290 = vadd.f32 %v157, %v289
  %v291 = vpop.f32.mrb[0].mxu0
  %v292 = vpop.f32.mrb[0].mxu0
  %v293 = vpop.f32.mrb[0].mxu0
  %294 = vdwg.mxu0
  %v295 = vmul.f32 %v290, 0.5
  %v296 = vtanh.pop %v295
  %v297 = vmul.f32 %v296, 0.5
  %v298 = vadd.f32 %v297, 0.5
  %v299 = vpack.c.bf16 %v298, %v298
  %v300 = vld [vmem:[%s5] sm:$0xf]
  %v301 = vld [vmem:[%s6] sm:$0xff]
  %303 = vset.pattern.permute.xlu0 0
  %304 = vperm.xlu0 %303, %v301
  %v305 = vpop.permute.xlu0 %304
  %307 = vmatprep.subr.bf16.mxu0 0
  %308 = vmatpush1.bf16.xpose.msra.mxu0 %v299
  %309 = vmatprep.subr.bf16.mxu0 0
  %310 = vmatpush1.bf16.xpose.msra.mxu0 0
  %311 = vmatprep.subr.bf16.mxu0 0
  %312 = vmatpush1.bf16.xpose.msra.mxu0 0
  %313 = vmatprep.subr.bf16.mxu0 0
  %314 = vmatpush1.bf16.xpose.msra.mxu0 0
  %315 = vmatprep.subr.bf16.mxu0 0
  %316 = vmatpush1.bf16.xpose.msra.mxu0 0
  %317 = vmatprep.subr.bf16.mxu0 0
  %318 = vmatpush1.bf16.xpose.msra.mxu0 0
  %319 = vmatprep.subr.bf16.mxu0 0
  %320 = vmatpush1.bf16.xpose.msra.mxu0 0
  %321 = vmatprep.subr.bf16.mxu0 0
  %322 = vmatpush1.bf16.xpose.msra.mxu0 0
  %323 = vmatprep.subr.bf16.mxu0 0
  %324 = vmatpush1.bf16.xpose.msra.mxu0 0
  %325 = vmatprep.subr.bf16.mxu0 0
  %326 = vmatpush1.bf16.xpose.msra.mxu0 0
  %327 = vmatprep.subr.bf16.mxu0 0
  %328 = vmatpush1.bf16.xpose.msra.mxu0 0
  %329 = vmatprep.subr.bf16.mxu0 0
  %330 = vmatpush1.bf16.xpose.msra.mxu0 0
  %331 = vmatprep.subr.bf16.mxu0 0
  %332 = vmatpush1.bf16.xpose.msra.mxu0 0
  %333 = vmatprep.subr.bf16.mxu0 0
  %334 = vmatpush1.bf16.xpose.msra.mxu0 0
  %335 = vmatprep.subr.bf16.mxu0 0
  %336 = vmatpush1.bf16.xpose.msra.mxu0 0
  %337 = vmatprep.subr.bf16.mxu0 0
  %338 = vmatpush1.bf16.xpose.msra.mxu0 0
  %339 = vmatprep.mubr.bf16.mxu0 0
  %340 = vmatmul.mubr.bf16.gmra.mrb[0].mxu0 %v300
  %v341 = vpop.f32.mrb[0].mxu0
  %v342 = vadd.f32 %v305, %v341
  %v343 = vpop.f32.mrb[0].mxu0
  %v344 = vpop.f32.mrb[0].mxu0
  %v345 = vpop.f32.mrb[0].mxu0
  %346 = vdwg.mxu0
  %vm347 = vcmask 64512
  %348 = vst.msk [vmem:[%s7] sm:$0xff] %vm347, %v342
  // Predicated region
  $region30: #{spendings_predictor3_forward.1} parent=0 // pred_check
    _
  $region31: #{spendings_predictor3_forward.1} parent=0 // pred_check_branch
    %350 = sbr.rel (0) target = $region33
  $region32: #{spendings_predictor3_forward.1} parent=0 // pred_region
    _
  $region33: #{spendings_predictor3_forward.1} parent=0 // pred_fallthru
    _
  // Predicated region
  $region34: #{spendings_predictor3_forward.1} parent=0 // pred_check
    _
  $region35: #{spendings_predictor3_forward.1} parent=0 // pred_check_branch
    %352 = sbr.rel (0) target = $region37
  $region36: #{spendings_predictor3_forward.1} parent=0 // pred_region
    _
  $region37: #{spendings_predictor3_forward.1} parent=0 // pred_fallthru
    _

</llo_original>
